<compile_context>
chip_gen: v7x
topology: tpu7x:2x2x1
jax: 0.10.0
libtpu: 0.0.40
codegen_flags: <defaults>
</compile_context>

<pallas_src>
import functools

import jax
import jax.numpy as jnp
from jax.experimental import pallas as pl
from jax.experimental.pallas import tpu as pltpu


def _gru_block_kernel(tok_ref, emb_ref, h0_ref, w_ref, b_ref, out_ref, xh_scr,
                      *, hidden_size, block_steps):
    """Runs `block_steps` GRU steps per grid iteration (compile-time unrolled).

    tok_ref : SMEM (T_pad,) int32 token ids (scalar prefetch)
    emb_ref : VMEM (V, H)   full embedding table (f32, resident)
    h0_ref  : VMEM (1, H)   initial hidden state (f32)
    w_ref   : VMEM (H, 6H)  [W_ih^T | W_hh^T] in bf16
    b_ref   : VMEM (2, 3H)  row 0 = b_ih, row 1 = b_hh (f32)
    out_ref : VMEM (block_steps, H) outputs for this time block (f32)
    xh_scr  : VMEM (2, H)   persistent [x; h] staging; row 1 carries hidden
    """
    H = hidden_size
    blk = pl.program_id(0)

    @pl.when(blk == 0)
    def _init():
        xh_scr[1:2, :] = h0_ref[...]

    # Compile-time-unrolled time loop: no per-step grid/pipeline overhead,
    # LLO scheduler sees all steps at once.
    for t in range(block_steps):
        tok = tok_ref[blk * block_steps + t]
        # In-kernel gather from the VMEM-resident table (no per-step DMA).
        xh_scr[0:1, :] = emb_ref[pl.ds(tok, 1), :]
        h = xh_scr[1:2, :]                                   # (1, H) f32

        # One fused bf16 MXU matmul: (2, H) @ (H, 6H) -> (2, 6H), f32 accum.
        g = jnp.dot(xh_scr[...].astype(jnp.bfloat16), w_ref[...],
                    preferred_element_type=jnp.float32)

        gi = g[0:1, 0:3 * H] + b_ref[0:1, :]                 # x @ W_ih^T + b_ih
        gh = g[1:2, 3 * H:6 * H] + b_ref[1:2, :]             # h @ W_hh^T + b_hh

        r = jax.nn.sigmoid(gi[:, 0:H] + gh[:, 0:H])
        z = jax.nn.sigmoid(gi[:, H:2 * H] + gh[:, H:2 * H])
        n = jnp.tanh(gi[:, 2 * H:3 * H] + r * gh[:, 2 * H:3 * H])

        h_new = (1.0 - z) * n + z * h                        # (1, H) f32

        xh_scr[1:2, :] = h_new                               # carry hidden
        out_ref[pl.ds(t, 1), :] = h_new                      # VMEM store only


def _gru_sequence(tokens, hidden, params, max_block_steps=32):
    """Run T GRU steps; tokens int32 (T,) -> outputs f32 (T, H)."""
    emb = params["embedding"].astype(jnp.float32)            # (V, H)
    V, H = emb.shape
    T = int(tokens.shape[0])

    # Time blocks of <= 32 steps; pad the token stream (padded steps run after
    # all real steps, so real outputs / final hidden are unaffected).
    t_blk = min(max_block_steps, T)
    nblk = -(-T // t_blk)
    T_pad = nblk * t_blk
    toks = jnp.pad(tokens.astype(jnp.int32), (0, T_pad - T))

    # Fused weights / biases (cheap host-side prep; could be cached by caller).
    w_cat = jnp.concatenate([params["w_ih"].T, params["w_hh"].T],
                            axis=1).astype(jnp.bfloat16)      # (H, 6H) bf16
    b_cat = jnp.stack([params["b_ih"], params["b_hh"]],
                      axis=0).astype(jnp.float32)             # (2, 3H) f32
    h0 = hidden.reshape(1, H).astype(jnp.float32)

    kernel = functools.partial(_gru_block_kernel,
                               hidden_size=H, block_steps=t_blk)

    out = pl.pallas_call(
        kernel,
        out_shape=jax.ShapeDtypeStruct((T_pad, H), jnp.float32),
        grid_spec=pltpu.PrefetchScalarGridSpec(
            num_scalar_prefetch=1,
            grid=(nblk,),
            in_specs=[
                # Grid-invariant operands: DMA'd once, VMEM-resident after.
                pl.BlockSpec((V, H), lambda i, tok: (0, 0)),          # embedding
                pl.BlockSpec((1, H), lambda i, tok: (0, 0)),          # h0
                pl.BlockSpec((H, 6 * H), lambda i, tok: (0, 0)),      # [W_ih^T|W_hh^T]
                pl.BlockSpec((2, 3 * H), lambda i, tok: (0, 0)),      # [b_ih; b_hh]
            ],
            # One output block per time block -> one writeback DMA per block.
            out_specs=pl.BlockSpec((t_blk, H), lambda i, tok: (i, 0)),
            scratch_shapes=[pltpu.VMEM((2, H), jnp.float32)],         # [x; h]
        ),
        compiler_params=pltpu.CompilerParams(
            dimension_semantics=("arbitrary",)),   # hidden carried across blocks
    )(toks, emb, h0, w_cat, b_cat)

    return out[:T]                                            # (T, H)


def encoder_rnn_forward(token, hidden, params):
    """Module-faithful single step.
    token: int32 (1,)  hidden: f32 (1,1,H)  ->  (output (1,1,H), hidden (1,1,H))
    """
    out = _gru_sequence(token.reshape(-1), hidden, params)    # (1, H)
    h_new = out.reshape(1, 1, -1)
    return h_new, h_new                                       # output == hidden


def encoder_rnn_forward_seq(tokens, hidden, params):
    """Whole-sequence variant (same cell; amortizes launch + weight DMA)."""
    out = _gru_sequence(tokens, hidden, params)                # (T, H)
    T, H = out.shape
    return out.reshape(T, 1, H), out[-1].reshape(1, 1, H)


# ---------------------------------------------------------------------------
# Pure-JAX references mirroring torch.nn.GRU (for correctness checks).
# `quantize=True` applies the same bf16 quantization the kernel uses on the
# matmul inputs (f32 accumulation), for a tight numerical check.
# ---------------------------------------------------------------------------
def _q(x):
    return x.astype(jnp.bfloat16).astype(jnp.float32)


def _gru_cell_ref(x, h, params, quantize=False):
    H = params["embedding"].shape[1]
    w_ih, w_hh = params["w_ih"], params["w_hh"]
    x_in, h_in = x, h
    if quantize:
        x_in, h_in, w_ih, w_hh = _q(x), _q(h), _q(w_ih), _q(w_hh)
    hp = jax.lax.Precision.HIGHEST
    gi = jnp.dot(x_in, w_ih.T, precision=hp) + params["b_ih"]
    gh = jnp.dot(h_in, w_hh.T, precision=hp) + params["b_hh"]
    r = jax.nn.sigmoid(gi[:, 0:H] + gh[:, 0:H])
    z = jax.nn.sigmoid(gi[:, H:2 * H] + gh[:, H:2 * H])
    n = jnp.tanh(gi[:, 2 * H:3 * H] + r * gh[:, 2 * H:3 * H])
    return (1.0 - z) * n + z * h                              # blend uses f32 h


def _reference_forward(token, hidden, params, quantize=False):
    H = params["embedding"].shape[1]
    x = params["embedding"][token[0]].reshape(1, H)
    h_new = _gru_cell_ref(x, hidden.reshape(1, H), params, quantize)
    return h_new.reshape(1, 1, H), h_new.reshape(1, 1, H)


def _reference_forward_seq(tokens, hidden, params, quantize=False):
    H = params["embedding"].shape[1]
    h = hidden.reshape(1, H)
    outs = []
    for t in range(tokens.shape[0]):
        x = params["embedding"][tokens[t]].reshape(1, H)
        h = _gru_cell_ref(x, h, params, quantize)
        outs.append(h)
    return jnp.stack(outs, axis=0), h.reshape(1, 1, H)


def init_params(key, input_size, hidden_size):
    """Deterministic parameter init matching the PyTorch shapes."""
    k_emb, k_wih, k_whh, k_bih, k_bhh = jax.random.split(key, 5)
    bound = 1.0 / jnp.sqrt(hidden_size)
    return {
        "embedding": jax.random.normal(k_emb, (input_size, hidden_size), jnp.float32),
        "w_ih": jax.random.uniform(k_wih, (3 * hidden_size, hidden_size),
                                   jnp.float32, -bound, bound),
        "w_hh": jax.random.uniform(k_whh, (3 * hidden_size, hidden_size),
                                   jnp.float32, -bound, bound),
        "b_ih": jax.random.uniform(k_bih, (3 * hidden_size,), jnp.float32, -bound, bound),
        "b_hh": jax.random.uniform(k_bhh, (3 * hidden_size,), jnp.float32, -bound, bound),
    }


if __name__ == "__main__":
    INPUT_SIZE = 16    # vocab size
    HIDDEN_SIZE = 32
    SEQ_LEN = 8

    key = jax.random.PRNGKey(0)
    k_params, k_tok = jax.random.split(key)

    params = init_params(k_params, INPUT_SIZE, HIDDEN_SIZE)
    hidden0 = jnp.zeros((1, 1, HIDDEN_SIZE), jnp.float32)   # EncoderRNN.initHidden()

    # --- module-faithful single step --------------------------------------
    token = jax.random.randint(k_tok, (1,), 0, INPUT_SIZE, dtype=jnp.int32)
    out, hid = encoder_rnn_forward(token, hidden0, params)
    out = jax.block_until_ready(out)
    hid = jax.block_until_ready(hid)

    ref_out, ref_hid = _reference_forward(token, hidden0, params)
    q_out, _ = _reference_forward(token, hidden0, params, quantize=True)
    assert out.shape == (1, 1, HIDDEN_SIZE) and hid.shape == (1, 1, HIDDEN_SIZE)
    # Tight check vs bf16-quantized reference (same math as the kernel).
    assert jnp.allclose(out, q_out, atol=1e-3, rtol=1e-3)
    # Looser check vs f32 module reference (bf16 matmul inputs, f32 accum).
    assert jnp.allclose(out, ref_out, atol=5e-2, rtol=0.0)
    assert jnp.allclose(hid, ref_hid, atol=5e-2, rtol=0.0)
    print("single-step max |kernel - f32 ref| =",
          float(jnp.max(jnp.abs(out - ref_out))))

    # --- whole sequence in one pallas_call (amortizes launch + weight DMA) -
    tokens = jax.random.randint(k_tok, (SEQ_LEN,), 0, INPUT_SIZE, dtype=jnp.int32)
    outs, hid_T = encoder_rnn_forward_seq(tokens, hidden0, params)
    outs = jax.block_until_ready(outs)
    hid_T = jax.block_until_ready(hid_T)

    ref_outs, ref_hid_T = _reference_forward_seq(tokens, hidden0, params)
    q_outs, _ = _reference_forward_seq(tokens, hidden0, params, quantize=True)
    assert outs.shape == (SEQ_LEN, 1, HIDDEN_SIZE)
    assert jnp.allclose(outs, q_outs, atol=2e-3, rtol=1e-3)
    assert jnp.allclose(outs, ref_outs, atol=5e-2, rtol=0.0)
    assert jnp.allclose(hid_T, ref_hid_T, atol=5e-2, rtol=0.0)
    print("sequence    max |kernel - f32 ref| =",
          float(jnp.max(jnp.abs(outs - ref_outs))))

    print("KERNEL_OK")
</pallas_src>

<mosaic_0001>
module attributes {stable_mosaic.version = 11 : i64} {
  func.func @_gru_block_kernel(%arg0: i32, %arg1: memref<1xi32, #tpu.memory_space<smem>>, %arg2: memref<16x32xf32, #tpu.memory_space<vmem>>, %arg3: memref<1x32xf32, #tpu.memory_space<vmem>>, %arg4: memref<32x192xbf16, #tpu.memory_space<vmem>>, %arg5: memref<2x96xf32, #tpu.memory_space<vmem>>, %arg6: memref<1x32xf32, #tpu.memory_space<vmem>>, %arg7: memref<2x32xf32, #tpu.memory_space<vmem>>) attributes {dimension_semantics = [#tpu.dimension_semantics<arbitrary>], iteration_bounds = array<i64: 1>, scalar_prefetch = 1 : i64, scratch_operands = 1 : i64, tpu.core_type = #tpu.core_type<tc>, window_params = [{pipeline_mode = #tpu.pipeline_mode<synchronous>, transform_indices = @transform_0, window_bounds = array<i64: 16, 32>}, {pipeline_mode = #tpu.pipeline_mode<synchronous>, transform_indices = @transform_1, window_bounds = array<i64: 1, 32>}, {pipeline_mode = #tpu.pipeline_mode<synchronous>, transform_indices = @transform_2, window_bounds = array<i64: 32, 192>}, {pipeline_mode = #tpu.pipeline_mode<synchronous>, transform_indices = @transform_3, window_bounds = array<i64: 2, 96>}, {transform_indices = @transform_4, window_bounds = array<i64: 1, 32>}]} {
    %c0_i32 = arith.constant 0 : i32
    %0 = arith.cmpi eq, %arg0, %c0_i32 : i32
    %1 = arith.extui %0 : i1 to i32
    %c0_i32_0 = arith.constant 0 : i32
    %2 = arith.cmpi ne, %1, %c0_i32_0 : i32
    scf.if %2 {
      %c0_20 = arith.constant 0 : index
      %c0_21 = arith.constant 0 : index
      %49 = vector.load %arg3[%c0_20, %c0_21] : memref<1x32xf32, #tpu.memory_space<vmem>>, vector<1x32xf32>
      %c1_22 = arith.constant 1 : index
      %c0_23 = arith.constant 0 : index
      %50 = vector.load %arg7[%c1_22, %c0_23] : memref<2x32xf32, #tpu.memory_space<vmem>>, vector<1x32xf32>
      tpu.vector_store %arg7[%c1_22, %c0_23], %49 {strides = array<i32>} : memref<2x32xf32, #tpu.memory_space<vmem>>, vector<1x32xf32>,
    } else {
    }
    %c1_i32 = arith.constant 1 : i32
    %3 = arith.muli %arg0, %c1_i32 : i32
    %c0_i32_1 = arith.constant 0 : i32
    %4 = arith.addi %3, %c0_i32_1 : i32
    %5 = arith.index_cast %4 : i32 to index
    %6 = memref.load %arg1[%5] : memref<1xi32, #tpu.memory_space<smem>>
    %7 = arith.index_cast %6 : i32 to index
    %c0 = arith.constant 0 : index
    %8 = vector.load %arg2[%7, %c0] : memref<16x32xf32, #tpu.memory_space<vmem>>, vector<1x32xf32>
    %c0_2 = arith.constant 0 : index
    %c0_3 = arith.constant 0 : index
    %9 = vector.load %arg7[%c0_2, %c0_3] : memref<2x32xf32, #tpu.memory_space<vmem>>, vector<1x32xf32>
    tpu.vector_store %arg7[%c0_2, %c0_3], %8 {strides = array<i32>} : memref<2x32xf32, #tpu.memory_space<vmem>>, vector<1x32xf32>,
    %c1 = arith.constant 1 : index
    %c0_4 = arith.constant 0 : index
    %10 = vector.load %arg7[%c1, %c0_4] : memref<2x32xf32, #tpu.memory_space<vmem>>, vector<1x32xf32>
    %c0_5 = arith.constant 0 : index
    %c0_6 = arith.constant 0 : index
    %11 = vector.load %arg7[%c0_5, %c0_6] : memref<2x32xf32, #tpu.memory_space<vmem>>, vector<2x32xf32>
    %12 = arith.truncf %11 : vector<2x32xf32> to vector<2x32xbf16>
    %c0_7 = arith.constant 0 : index
    %c0_8 = arith.constant 0 : index
    %13 = vector.load %arg4[%c0_7, %c0_8] : memref<32x192xbf16, #tpu.memory_space<vmem>>, vector<32x192xbf16>
    %cst = arith.constant dense<0.000000e+00> : vector<2x192xf32>
    %14 = tpu.matmul %12, %13, %cst {dimension_numbers = #tpu.dot_dimension_numbers<[1], [0], [0], [1], [0, 0, 1, 1], [], []>} : vector<2x32xbf16>, vector<32x192xbf16>, vector<2x192xf32> -> vector<2x192xf32>
    %15 = vector.extract_strided_slice %14 {offsets = [0, 0], sizes = [1, 96], strides = [1, 1]} : vector<2x192xf32> to vector<1x96xf32>
    %c0_9 = arith.constant 0 : index
    %c0_10 = arith.constant 0 : index
    %16 = vector.load %arg5[%c0_9, %c0_10] : memref<2x96xf32, #tpu.memory_space<vmem>>, vector<1x96xf32>
    %17 = arith.addf %15, %16 : vector<1x96xf32>
    %18 = vector.extract_strided_slice %14 {offsets = [1, 96], sizes = [1, 96], strides = [1, 1]} : vector<2x192xf32> to vector<1x96xf32>
    %c1_11 = arith.constant 1 : index
    %c0_12 = arith.constant 0 : index
    %19 = vector.load %arg5[%c1_11, %c0_12] : memref<2x96xf32, #tpu.memory_space<vmem>>, vector<1x96xf32>
    %20 = arith.addf %18, %19 : vector<1x96xf32>
    %21 = vector.extract_strided_slice %17 {offsets = [0, 0], sizes = [1, 32], strides = [1, 1]} : vector<1x96xf32> to vector<1x32xf32>
    %22 = vector.extract_strided_slice %20 {offsets = [0, 0], sizes = [1, 32], strides = [1, 1]} : vector<1x96xf32> to vector<1x32xf32>
    %23 = arith.addf %21, %22 : vector<1x32xf32>
    %24 = arith.negf %23 : vector<1x32xf32>
    %25 = math.exp %24 : vector<1x32xf32>
    %cst_13 = arith.constant 1.000000e+00 : f32
    %26 = vector.broadcast %cst_13 : f32 to vector<1x32xf32>
    %27 = arith.addf %26, %25 : vector<1x32xf32>
    %28 = arith.divf %26, %27 : vector<1x32xf32>
    %29 = vector.extract_strided_slice %17 {offsets = [0, 32], sizes = [1, 32], strides = [1, 1]} : vector<1x96xf32> to vector<1x32xf32>
    %30 = vector.extract_strided_slice %20 {offsets = [0, 32], sizes = [1, 32], strides = [1, 1]} : vector<1x96xf32> to vector<1x32xf32>
    %31 = arith.addf %29, %30 : vector<1x32xf32>
    %32 = arith.negf %31 : vector<1x32xf32>
    %33 = math.exp %32 : vector<1x32xf32>
    %cst_14 = arith.constant 1.000000e+00 : f32
    %34 = vector.broadcast %cst_14 : f32 to vector<1x32xf32>
    %35 = arith.addf %34, %33 : vector<1x32xf32>
    %36 = arith.divf %34, %35 : vector<1x32xf32>
    %37 = vector.extract_strided_slice %17 {offsets = [0, 64], sizes = [1, 32], strides = [1, 1]} : vector<1x96xf32> to vector<1x32xf32>
    %38 = vector.extract_strided_slice %20 {offsets = [0, 64], sizes = [1, 32], strides = [1, 1]} : vector<1x96xf32> to vector<1x32xf32>
    %39 = arith.mulf %28, %38 : vector<1x32xf32>
    %40 = arith.addf %37, %39 : vector<1x32xf32>
    %41 = math.tanh %40 : vector<1x32xf32>
    %cst_15 = arith.constant 1.000000e+00 : f32
    %42 = vector.broadcast %cst_15 : f32 to vector<1x32xf32>
    %43 = arith.subf %42, %36 : vector<1x32xf32>
    %44 = arith.mulf %43, %41 : vector<1x32xf32>
    %45 = arith.mulf %36, %10 : vector<1x32xf32>
    %46 = arith.addf %44, %45 : vector<1x32xf32>
    %c1_16 = arith.constant 1 : index
    %c0_17 = arith.constant 0 : index
    %47 = vector.load %arg7[%c1_16, %c0_17] : memref<2x32xf32, #tpu.memory_space<vmem>>, vector<1x32xf32>
    tpu.vector_store %arg7[%c1_16, %c0_17], %46 {strides = array<i32>} : memref<2x32xf32, #tpu.memory_space<vmem>>, vector<1x32xf32>,
    %c0_18 = arith.constant 0 : index
    %c0_19 = arith.constant 0 : index
    %48 = vector.load %arg6[%c0_18, %c0_19] : memref<1x32xf32, #tpu.memory_space<vmem>>, vector<1x32xf32>
    tpu.vector_store %arg6[%c0_18, %c0_19], %46 {strides = array<i32>} : memref<1x32xf32, #tpu.memory_space<vmem>>, vector<1x32xf32>,
    return
  }
  func.func @transform_0(%arg0: i32, %arg1: memref<1xi32, #tpu.memory_space<smem>>) -> (i32, i32) {
    %c0_i32 = arith.constant 0 : i32
    %c0_i32_0 = arith.constant 0 : i32
    %c0_i32_1 = arith.constant 0 : i32
    return %c0_i32, %c0_i32_0 : i32, i32
  }
  func.func @transform_1(%arg0: i32, %arg1: memref<1xi32, #tpu.memory_space<smem>>) -> (i32, i32) {
    %c0_i32 = arith.constant 0 : i32
    %c0_i32_0 = arith.constant 0 : i32
    %c0_i32_1 = arith.constant 0 : i32
    return %c0_i32, %c0_i32_0 : i32, i32
  }
  func.func @transform_2(%arg0: i32, %arg1: memref<1xi32, #tpu.memory_space<smem>>) -> (i32, i32) {
    %c0_i32 = arith.constant 0 : i32
    %c0_i32_0 = arith.constant 0 : i32
    %c0_i32_1 = arith.constant 0 : i32
    return %c0_i32, %c0_i32_0 : i32, i32
  }
  func.func @transform_3(%arg0: i32, %arg1: memref<1xi32, #tpu.memory_space<smem>>) -> (i32, i32) {
    %c0_i32 = arith.constant 0 : i32
    %c0_i32_0 = arith.constant 0 : i32
    %c0_i32_1 = arith.constant 0 : i32
    return %c0_i32, %c0_i32_0 : i32, i32
  }
  func.func @transform_4(%arg0: i32, %arg1: memref<1xi32, #tpu.memory_space<smem>>) -> (i32, i32) {
    %c0_i32 = arith.constant 0 : i32
    %c0_i32_0 = arith.constant 0 : i32
    return %arg0, %c0_i32 : i32, i32
  }
}

</mosaic_0001>

<llo_original>
// kernel: tpu_custom_call.1
$region0: #{tpu_custom_call.1}
  #allocation0 [shape = 'u32[]', space=smem, size = 0x4, offset = 0x4, fixed_abs, tag = 'smem constant byte address 0x4 - core index']
  #allocation1 [shape = 'u32[144,128]{1,0:T(1,128)}', space=vmem, size = 0x12000, scoped, tag = 'internal scratch']
  #allocation2 [shape = 'f32[2,32]{1,0:T(2,128)}', space=vmem, size = 0x400, scoped, tag = 'scratch operand']
  #allocation3 [shape = 's32[1]{0}', space=sflag, size = 0x4, scoped, tag = 'scoped memory for tpu_custom_call.1']
  #allocation4 [shape = 's32[1]{0:T(128)S(6)}', space=smem, size = 0x200, scoped, tag = 'prefetched SMEM operand 0']
  %s0 = inlined_call_operand.<no memory space> [shape: s32[1], index: 0, kind: input, shape index: {}]
  %s1 = inlined_call_operand.hbm [shape: f32[16,32], index: 1, kind: input, shape index: {}]
  %s2 = inlined_call_operand.vmem [shape: f32[1,32], index: 2, kind: input, shape index: {}]
  %s3 = inlined_call_operand.hbm [shape: bf16[32,192], index: 3, kind: input, shape index: {}]
  %s4 = inlined_call_operand.vmem [shape: f32[2,96], index: 4, kind: input, shape index: {}]
  %s5 = inlined_call_operand.hbm [shape: f32[1,32], index: 5, kind: output, shape index: {}]
  %s6 = sld [smem:[#allocation0]]
  $region38: #{tpu_custom_call.1} parent=0
    _
  %s8 = ssub.s32 1, %s6
  %s9 = scalar_select 0, %s8, %s6
  %10 = sst [smem:[#allocation4]] %s0
  $region1: #{tpu_custom_call.1} parent=0
    #allocation5 [shape = 'u8[8192]{0}', space=vmem, size = 0x2000, scoped, tag = 'input window, operand 1, single buffered']
    #allocation6 [shape = 's32[1]{0}', space=sflag, size = 0x4, scoped, tag = 'scoped memory for tpu_custom_call.1']
    #allocation7 [shape = 's32[1]{0}', space=sflag, size = 0x4, scoped, tag = 'scoped memory for tpu_custom_call.1']
    #allocation8 [shape = 'u8[16384]{0}', space=vmem, size = 0x4000, scoped, tag = 'input window, operand 3, single buffered']
    #allocation9 [shape = 's32[1]{0}', space=sflag, size = 0x4, scoped, tag = 'scoped memory for tpu_custom_call.1']
    #allocation10 [shape = 'u8[512]{0}', space=vmem, size = 0x400, scoped, tag = 'output window, operand 0, single buffered']
    %11 = vsyncpa [#allocation6], 0
    %12 = vsyncpa [#allocation9], 0
    %13 = vsyncpa [#allocation7], 0
    // Predicated region
    $region2: #{tpu_custom_call.1} parent=1 // pred_check
      _
    $region3: #{tpu_custom_call.1} parent=1 // pred_check_branch
      %15 = sbr.rel (0) target = $region5
    $region4: #{tpu_custom_call.1} parent=1 // pred_region
      %s17 = ssub.s32 256, 256
      %18 = vsyncadd [#allocation6], %s17
      %s19 = sshll.u32 [#allocation5], 4
      %s20 = int_to_ptr.vmem [resolvable:$true] %s19
      %25 = dma.hbm_to_vmem [thread:$0]  %s1, 256, %s20, [#allocation6], 128, 128, 8
    $region5: #{tpu_custom_call.1} parent=1 // pred_fallthru
      _
    // Predicated region
    $region6: #{tpu_custom_call.1} parent=1 // pred_check
      _
    $region7: #{tpu_custom_call.1} parent=1 // pred_check_branch
      %27 = sbr.rel (0) target = $region9
    $region8: #{tpu_custom_call.1} parent=1 // pred_region
      _
    $region9: #{tpu_custom_call.1} parent=1 // pred_fallthru
      _
    // Predicated region
    $region10: #{tpu_custom_call.1} parent=1 // pred_check
      _
    $region11: #{tpu_custom_call.1} parent=1 // pred_check_branch
      %29 = sbr.rel (0) target = $region13
    $region12: #{tpu_custom_call.1} parent=1 // pred_region
      %s31 = ssub.s32 512, 512
      %32 = vsyncadd [#allocation9], %s31
      %s33 = sshll.u32 [#allocation8], 4
      %s34 = int_to_ptr.vmem [resolvable:$true] %s33
      %39 = dma.hbm_to_vmem [thread:$0]  %s3, 512, %s34, [#allocation9], 128, 128, 8
    $region13: #{tpu_custom_call.1} parent=1 // pred_fallthru
      _
    // Predicated region
    $region14: #{tpu_custom_call.1} parent=1 // pred_check
      _
    $region15: #{tpu_custom_call.1} parent=1 // pred_check_branch
      %41 = sbr.rel (0) target = $region17
    $region16: #{tpu_custom_call.1} parent=1 // pred_region
      _
    $region17: #{tpu_custom_call.1} parent=1 // pred_fallthru
      _
    // Predicated region
    $region18: #{tpu_custom_call.1} parent=1 // pred_check
      _
    $region19: #{tpu_custom_call.1} parent=1 // pred_check_branch
      %43 = sbr.rel (0) target = $region21
    $region20: #{tpu_custom_call.1} parent=1 // pred_region
      %44 = dma.done [#allocation6], 256
    $region21: #{tpu_custom_call.1} parent=1 // pred_fallthru
      _
    // Predicated region
    $region22: #{tpu_custom_call.1} parent=1 // pred_check
      _
    $region23: #{tpu_custom_call.1} parent=1 // pred_check_branch
      %46 = sbr.rel (0) target = $region25
    $region24: #{tpu_custom_call.1} parent=1 // pred_region
      %47 = dma.done [#allocation9], 512
    $region25: #{tpu_custom_call.1} parent=1 // pred_fallthru
      _
    %p49 = scmp.eq.s32.totalorder 0, 0
    // Predicated region
    $region26: #{tpu_custom_call.1} parent=1 // pred_check
      %p50 = pneg %p49
    $region27: #{tpu_custom_call.1} parent=1 // pred_check_branch
      %52 = sbr.rel (%p50) target = $region29
    $region28: #{tpu_custom_call.1} parent=1 // pred_region
      %v53 = vld [vmem:[%s2] sm:$0x1]
      %vm54 = vcmask 253952
      %55 = vst.msk [vmem:[#allocation2 + $0x1] sm:$0x1] %vm54, %v53
    $region29: #{tpu_custom_call.1} parent=1 // pred_fallthru
      _
    %s56 = sld [smem:[#allocation4]]
    %s57 = scalar_lea.vmem [#allocation5], %s56
    %v58 = vld [vmem:[%s57] sm:$0x1]
    %vm59 = vcmask 253952
    %60 = vst.msk [vmem:[#allocation2] sm:$0x1] %vm59, %v58
    %v61 = vld [vmem:[#allocation2 + $0x1] sm:$0x1]
    %v62 = vld [vmem:[#allocation2] sm:$0x3]
    %v63 = vpack.c.bf16 %v62, %v62
    %v64 = vld [vmem:[#allocation8] sm:$0xff]
    %v65 = vld [vmem:[#allocation8 + $0x8] sm:$0xff]
    %v66 = vld [vmem:[#allocation8 + $0x10] sm:$0xff]
    %v67 = vld [vmem:[#allocation8 + $0x18] sm:$0xff]
    %v72 = vunpack.c.l.b16 %v64
    %v73 = vunpack.c.h.b16 %v64
    %v74 = vunpack.c.l.b16 %v65
    %v75 = vunpack.c.h.b16 %v65
    %v76 = vunpack.c.l.b16 %v66
    %v77 = vunpack.c.h.b16 %v66
    %v78 = vunpack.c.l.b16 %v67
    %v79 = vunpack.c.h.b16 %v67
    %v80 = vpack.c.b16 %v74, %v72
    %v81 = vpack.c.b16 %v75, %v73
    %v82 = vpack.c.b16 %v78, %v76
    %v83 = vpack.c.b16 %v79, %v77
    %vm88 = vcmask 261120
    %v90 = vsel %vm88, %v63, 0
    %92 = vmatprep.subr.bf16.mxu0 %v81
    %93 = vmatpush1.bf16.msra.mxu0 %v80
    %94 = vmatprep.subr.bf16.mxu0 %v83
    %95 = vmatpush1.bf16.msra.mxu0 %v82
    %96 = vmatprep.subr.bf16.mxu0 0
    %97 = vmatpush1.bf16.msra.mxu0 0
    %98 = vmatprep.subr.bf16.mxu0 0
    %99 = vmatpush1.bf16.msra.mxu0 0
    %100 = vmatprep.subr.bf16.mxu0 0
    %101 = vmatpush1.bf16.msra.mxu0 0
    %102 = vmatprep.subr.bf16.mxu0 0
    %103 = vmatpush1.bf16.msra.mxu0 0
    %104 = vmatprep.subr.bf16.mxu0 0
    %105 = vmatpush1.bf16.msra.mxu0 0
    %106 = vmatprep.subr.bf16.mxu0 0
    %107 = vmatpush1.bf16.msra.mxu0 0
    %108 = vmatprep.subr.bf16.mxu0 0
    %109 = vmatpush1.bf16.msra.mxu0 0
    %110 = vmatprep.subr.bf16.mxu0 0
    %111 = vmatpush1.bf16.msra.mxu0 0
    %112 = vmatprep.subr.bf16.mxu0 0
    %113 = vmatpush1.bf16.msra.mxu0 0
    %114 = vmatprep.subr.bf16.mxu0 0
    %115 = vmatpush1.bf16.msra.mxu0 0
    %116 = vmatprep.subr.bf16.mxu0 0
    %117 = vmatpush1.bf16.msra.mxu0 0
    %118 = vmatprep.subr.bf16.mxu0 0
    %119 = vmatpush1.bf16.msra.mxu0 0
    %120 = vmatprep.subr.bf16.mxu0 0
    %121 = vmatpush1.bf16.msra.mxu0 0
    %122 = vmatprep.subr.bf16.mxu0 0
    %123 = vmatpush1.bf16.msra.mxu0 0
    %124 = vmatprep.mubr.bf16.mxu0 0
    %125 = vmatmul.mubr.bf16.gmra.mrb[0].mxu0 %v90
    %v126 = vpop.f32.mrb[0].mxu0
    %v127 = vadd.f32 0.0, %v126
    %v128 = vpop.f32.mrb[0].mxu0
    %v129 = vadd.f32 0.0, %v128
    %v130 = vpop.f32.mrb[0].mxu0
    %v131 = vpop.f32.mrb[0].mxu0
    %132 = vdwg.mxu0
    %v133 = vld [vmem:[%s4] sm:$0x1]
    %v134 = vadd.f32 %v127, %v133
    %v135 = vld [vmem:[%s4 + $0x1] sm:$0x1]
    %v137 = vrot.slane %v135, 7
    %138 = vrot.lane.b32.xlu0 %v137, 96
    %v139 = vpop.permute.xlu0 %138
    %v141 = vadd.f32 %v127, %v139
    %v142 = vadd.f32 %v129, %v139
    %v144 = vrot.slane %v141, 1
    %145 = vrot.lane.b32.xlu0 %v144, 32
    %v146 = vpop.permute.xlu0 %145
    %v148 = vadd.f32 %v134, %v146
    %v149 = vxor.u32 %v148, 2147483648
    %v150 = vmul.f32 %v149, 1.442695
    %v151 = vpow.pop %v150
    %v152 = vadd.f32 %v151, 1.0
    %v153 = vrcp.pop %v152
    %v154 = vmul.f32 1.0, %v153
    %v156 = vrot.slane %v142, 1
    %157 = vrot.lane.b32.xlu0 %v156, 32
    %v158 = vpop.permute.xlu0 %157
    %v160 = vadd.f32 %v134, %v158
    %v161 = vxor.u32 %v160, 2147483648
    %v162 = vmul.f32 %v161, 1.442695
    %v163 = vpow.pop %v162
    %v164 = vadd.f32 %v163, 1.0
    %v165 = vrcp.pop %v164
    %v166 = vmul.f32 1.0, %v165
    %167 = vrot.lane.b32.xlu0 %v156, 96
    %v168 = vpop.permute.xlu0 %167
    %v170 = vmul.f32 %v154, %v168
    %172 = vrot.lane.b32.xlu0 %v170, 64
    %v173 = vpop.permute.xlu0 %172
    %v175 = vadd.f32 %v134, %v173
    %v176 = vtanh.pop %v175
    %v177 = vsub.f32 1.0, %v166
    %179 = vrot.lane.b32.xlu0 %v176, 96
    %v180 = vpop.permute.xlu0 %179
    %v182 = vmul.f32 %v177, %v180
    %184 = vrot.lane.b32.xlu0 %v61, 32
    %v185 = vpop.permute.xlu0 %184
    %v187 = vmul.f32 %v166, %v185
    %v188 = vadd.f32 %v182, %v187
    %190 = vrot.lane.b32.xlu0 %v188, 96
    %v191 = vpop.permute.xlu0 %190
    %193 = vst.msk [vmem:[#allocation2 + $0x1] sm:$0x1] %vm59, %v191
    %194 = vst.msk [vmem:[#allocation10] sm:$0x1] %vm59, %v191
    // Predicated region
    $region30: #{tpu_custom_call.1} parent=1 // pred_check
      _
    $region31: #{tpu_custom_call.1} parent=1 // pred_check_branch
      %196 = sbr.rel (0) target = $region33
    $region32: #{tpu_custom_call.1} parent=1 // pred_region
      %s198 = ssub.s32 16, 16
      %199 = vsyncadd [#allocation7], %s198
      %s201 = sshll.u32 [#allocation10], 4
      %s202 = int_to_ptr.vmem [resolvable:$true] %s201
      %204 = dma.vmem_to_hbm [thread:$0]  %s202, 16, %s5, [#allocation7]
    $region33: #{tpu_custom_call.1} parent=1 // pred_fallthru
      _
    // Predicated region
    $region34: #{tpu_custom_call.1} parent=1 // pred_check
      _
    $region35: #{tpu_custom_call.1} parent=1 // pred_check_branch
      %206 = sbr.rel (0) target = $region37
    $region36: #{tpu_custom_call.1} parent=1 // pred_region
      %207 = dma.done [#allocation7], 16
    $region37: #{tpu_custom_call.1} parent=1 // pred_fallthru
      _
    %208 = vsyncpa [#allocation6], 1
    %209 = vsyncpa [#allocation9], 1
    %210 = vsyncpa [#allocation7], 1

</llo_original>
